<compile_context>
chip_gen: v6e
topology: v6e:2x2x1
jax: 0.10.0
libtpu: 0.0.40
codegen_flags: <defaults>
</compile_context>

<pallas_src>
import functools
import math

import jax
import jax.numpy as jnp
from jax import lax
from jax.experimental import pallas as pl
from jax.experimental.pallas import tpu as pltpu

_MASK_VALUE = -1e30  # score bias for padded key columns (softmax weight -> 0)


def _round_up(x: int, m: int) -> int:
    return (x + m - 1) // m * m


def _choose_tile(n: int, target: int, max_waste: float = 0.25):
    """Pick (tile, padded_extent) for a sequence dimension.

    Prefers the largest tile <= target whose zero-padding waste stays below
    `max_waste`, instead of falling back to tiny 8-wide tiles for awkward
    lengths (e.g. 1000 -> tile 512, padded to 1024)."""
    n8 = _round_up(max(n, 1), 8)
    for t in (target, 512, 256, 128, 64, 32, 16, 8):
        if t > target:
            continue
        padded = _round_up(n8, t)
        if padded <= n8 * (1.0 + max_waste):
            return t, padded
    return 8, n8


def _flash_attn_kernel(q_ref, k_ref, v_ref, o_ref,
                       qs_sc, m_sc, l_sc, acc_sc,
                       *, inv_norm, kv_real, kv_tile, mask_kv, num_heads):
    """One (batch, q-tile, kv-tile) grid step.

    q_ref:  (tq, h, d)     k_ref: (tk, h, d)     v_ref: (tk, h, dv)
    o_ref:  (tq, h, dv)
    qs_sc:  (h, tq, d)   pre-scaled q (input dtype), hoisted out of the kv loop
    m_sc:   (h, tq, 1)   running row max (f32)
    l_sc:   (h, tq, 1)   running softmax denominator (f32)
    acc_sc: (h, tq, dv)  running output accumulator (f32)
    """
    ki = pl.program_id(2)

    @pl.when(ki == 0)
    def _init():
        m_sc[...] = jnp.full_like(m_sc, -jnp.inf)
        l_sc[...] = jnp.zeros_like(l_sc)
        acc_sc[...] = jnp.zeros_like(acc_sc)
        for j in range(num_heads):
            # 1/sqrt(kv_channels) folded into q ONCE per q tile (not once per
            # kv step); the write also turns the strided (tq, h, d) head slice
            # into a dense (tq, d) slab the kv loop re-reads cheaply.
            qs_sc[j] = (q_ref[:, j, :] * inv_norm).astype(qs_sc.dtype)

    if mask_kv:
        # Padded key columns get a large negative score so they vanish from
        # the softmax; padded QUERY rows are simply sliced off by the caller.
        col = ki * kv_tile + lax.broadcasted_iota(jnp.int32, (1, kv_tile), 1)
        valid = col < kv_real

    for j in range(num_heads):
        # scores = (q / sqrt(d)) @ k^T : f32 MXU accumulation, no operand
        # upcast, no materialized k.T.
        s = lax.dot_general(qs_sc[j], k_ref[:, j, :],
                            (((1,), (1,)), ((), ())),
                            preferred_element_type=jnp.float32)     # (tq, tk)
        if mask_kv:
            s = jnp.where(valid, s, _MASK_VALUE)

        # Online softmax update (all elementwise math in f32).
        m_prev = m_sc[j]
        m_new = jnp.maximum(m_prev, jnp.max(s, axis=-1, keepdims=True))
        alpha = jnp.exp(m_prev - m_new)
        p = jnp.exp(s - m_new)                                      # (tq, tk)
        l_sc[j] = alpha * l_sc[j] + jnp.sum(p, axis=-1, keepdims=True)
        # Probs cast back to the input dtype before the value matmul, matching
        # TorchScaledMaskedSoftmax returning probs.to(dtype).
        acc_sc[j] = alpha * acc_sc[j] + lax.dot_general(
            p.astype(v_ref.dtype), v_ref[:, j, :],
            (((1,), (0,)), ((), ())),
            preferred_element_type=jnp.float32)
        m_sc[j] = m_new

    @pl.when(ki == pl.num_programs(2) - 1)
    def _finalize():
        for j in range(num_heads):
            # Exact division (the tolerance fix): it runs once per q tile on a
            # (tq, 1) vector, so the approx reciprocal bought nothing.
            o_ref[:, j, :] = (acc_sc[j] / l_sc[j]).astype(o_ref.dtype)


def dot_product_attention(query, key, value, kv_channels, attention_mask=None,
                          *, tq_target=512, tk_target=512,
                          vmem_block_budget=32 * 1024 * 1024):
    """[seq, batch, heads, head_dim] q/k/v -> [seq, batch, heads*head_dim].

    Equivalent to TorchDotProductAttention(kv_channels, attention_dropout=0.0)
    with attention_mask=None.
    """
    if attention_mask is not None:
        # TODO(synk): attention_mask path of TorchScaledMaskedSoftmax not implemented.
        raise NotImplementedError("attention_mask is not supported")

    sq, b, h, d = query.shape
    sk = key.shape[0]
    dv = value.shape[3]
    dtype = query.dtype
    isz = jnp.dtype(dtype).itemsize

    tq, sq_pad = _choose_tile(sq, tq_target)
    tk, sk_pad = _choose_tile(sk, tk_target)

    # Per-step VMEM footprint: double-buffered I/O blocks + persistent scratch,
    # including (8,128) layout padding of the minor two dims.  Budgeted so the
    # same tiling stays inside v7x's 64 MiB physical VMEM (with headroom for
    # the (tq, tk) f32 score/probs temporaries), while still letting v5e/v6e
    # hold the whole K/V of modest sequences resident in a single kv tile.
    def _footprint(tq_, tk_):
        qo = tq_ * _round_up(h, 8) * (_round_up(d, 128) + _round_up(dv, 128)) * isz
        kv = tk_ * _round_up(h, 8) * (_round_up(d, 128) + _round_up(dv, 128)) * isz
        scr = (h * _round_up(tq_, 8) * _round_up(d, 128) * isz       # scaled q
               + 2 * h * _round_up(tq_, 8) * 128 * 4                 # m, l
               + h * _round_up(tq_, 8) * _round_up(dv, 128) * 4)     # acc
        return 2 * (qo + kv) + scr

    while _footprint(tq, tk) > vmem_block_budget and max(tq, tk) > 8:
        if tk >= tq:
            tk //= 2
        else:
            tq //= 2

    # Zero-pad awkward sequence lengths to a tile multiple (padded keys are
    # masked in-kernel; padded query rows are discarded below).
    if sq_pad != sq:
        query = jnp.pad(query, ((0, sq_pad - sq), (0, 0), (0, 0), (0, 0)))
    if sk_pad != sk:
        key = jnp.pad(key, ((0, sk_pad - sk), (0, 0), (0, 0), (0, 0)))
        value = jnp.pad(value, ((0, sk_pad - sk), (0, 0), (0, 0), (0, 0)))

    n_q = sq_pad // tq
    n_kv = sk_pad // tk

    kernel = functools.partial(
        _flash_attn_kernel,
        inv_norm=1.0 / math.sqrt(kv_channels),
        kv_real=sk, kv_tile=tk, mask_kv=(sk_pad != sk), num_heads=h)

    out = pl.pallas_call(
        kernel,
        out_shape=jax.ShapeDtypeStruct((sq_pad, b, h, dv), dtype),
        grid_spec=pltpu.PrefetchScalarGridSpec(
            num_scalar_prefetch=0,
            # kv (reduction) axis innermost; batch / q-tile axes independent.
            # With a single kv tile the K/V block index is constant across
            # consecutive q tiles, so K/V are not re-fetched from HBM.
            grid=(b, n_q, n_kv),
            # Q/K/V indexed directly in their native [s, b, h, d] layout
            # (batch squeezed per step) -> no pre-kernel transpose round trips.
            in_specs=[
                pl.BlockSpec((tq, None, h, d), lambda bi, qi, ki: (qi, bi, 0, 0)),
                pl.BlockSpec((tk, None, h, d), lambda bi, qi, ki: (ki, bi, 0, 0)),
                pl.BlockSpec((tk, None, h, dv), lambda bi, qi, ki: (ki, bi, 0, 0)),
            ],
            # Output produced directly in [s, b, h, dv] layout so the final
            # [s, b, h*dv] reshape in the wrapper is a free view.
            out_specs=pl.BlockSpec((tq, None, h, dv),
                                   lambda bi, qi, ki: (qi, bi, 0, 0)),
            scratch_shapes=[
                pltpu.VMEM((h, tq, d), dtype),         # pre-scaled q
                pltpu.VMEM((h, tq, 1), jnp.float32),   # running max m
                pltpu.VMEM((h, tq, 1), jnp.float32),   # running denom l
                pltpu.VMEM((h, tq, dv), jnp.float32),  # output accumulator
            ],
        ),
        compiler_params=pltpu.CompilerParams(
            dimension_semantics=("parallel", "parallel", "arbitrary"),
            vmem_limit_bytes=48 * 1024 * 1024,
        ),
    )(query, key, value)

    if sq_pad != sq:
        out = out[:sq]
    return out.reshape(sq, b, h * dv)


def _reference(query, key, value, kv_channels):
    # Pure-JAX reference mirroring the PyTorch module's math.
    sq, b, h, d = query.shape
    q = jnp.einsum("sbhd->bhsd", query).astype(jnp.float32)
    k = jnp.einsum("sbhd->bhsd", key).astype(jnp.float32)
    v = jnp.einsum("sbhd->bhsd", value)
    scores = jnp.einsum("bhqd,bhkd->bhqk", q, k) / math.sqrt(kv_channels)
    probs = jax.nn.softmax(scores, axis=-1).astype(query.dtype)
    ctx = jnp.einsum("bhqk,bhkd->bhqd", probs, v)
    return jnp.einsum("bhqd->qbhd", ctx).reshape(sq, b, -1)


if __name__ == "__main__":
    seq, batch, heads, kv_channels = 8, 2, 2, 32

    key0 = jax.random.PRNGKey(0)
    kq, kk, kv = jax.random.split(key0, 3)
    q = jax.random.normal(kq, (seq, batch, heads, kv_channels), dtype=jnp.float32)
    k = jax.random.normal(kk, (seq, batch, heads, kv_channels), dtype=jnp.float32)
    v = jax.random.normal(kv, (seq, batch, heads, kv_channels), dtype=jnp.float32)

    out = jax.block_until_ready(dot_product_attention(q, k, v, kv_channels))
    ref = _reference(q, k, v, kv_channels)
    assert out.shape == (seq, batch, heads * kv_channels)
    err = float(jnp.max(jnp.abs(out - ref)))
    # Default-precision MXU passes (bf16 multiplies, f32 accumulation) bound
    # the error for these O(1) f32 inputs; observed max-abs error is a few e-3.
    assert err < 2e-2, err

    # Padded/masked kv path (sk=12 is not a tile multiple -> in-kernel key mask).
    k2 = jax.random.normal(kk, (12, batch, heads, kv_channels), dtype=jnp.float32)
    v2 = jax.random.normal(kv, (12, batch, heads, kv_channels), dtype=jnp.float32)
    out2 = jax.block_until_ready(dot_product_attention(q, k2, v2, kv_channels))
    err2 = float(jnp.max(jnp.abs(out2 - _reference(q, k2, v2, kv_channels))))
    assert err2 < 2e-2, err2

    # Multi-tile online-softmax path (2 q tiles x 2 kv tiles).
    q3 = jax.random.normal(kq, (32, batch, heads, kv_channels), dtype=jnp.float32)
    k3 = jax.random.normal(kk, (32, batch, heads, kv_channels), dtype=jnp.float32)
    v3 = jax.random.normal(kv, (32, batch, heads, kv_channels), dtype=jnp.float32)
    out3 = jax.block_until_ready(
        dot_product_attention(q3, k3, v3, kv_channels, tq_target=16, tk_target=16))
    err3 = float(jnp.max(jnp.abs(out3 - _reference(q3, k3, v3, kv_channels))))
    assert err3 < 2e-2, err3

    print("KERNEL_OK")
</pallas_src>

<mosaic_0001>
module attributes {stable_mosaic.version = 11 : i64} {
  func.func @_flash_attn_kernel(%arg0: i32, %arg1: i32, %arg2: i32, %arg3: memref<8x1x2x32xf32, #tpu.memory_space<vmem>>, %arg4: memref<8x1x2x32xf32, #tpu.memory_space<vmem>>, %arg5: memref<8x1x2x32xf32, #tpu.memory_space<vmem>>, %arg6: memref<8x1x2x32xf32, #tpu.memory_space<vmem>>, %arg7: memref<2x8x32xf32, #tpu.memory_space<vmem>>, %arg8: memref<2x8x1xf32, #tpu.memory_space<vmem>>, %arg9: memref<2x8x1xf32, #tpu.memory_space<vmem>>, %arg10: memref<2x8x32xf32, #tpu.memory_space<vmem>>) attributes {dimension_semantics = [#tpu.dimension_semantics<parallel>, #tpu.dimension_semantics<parallel>, #tpu.dimension_semantics<arbitrary>], iteration_bounds = array<i64: 2, 1, 1>, scalar_prefetch = 0 : i64, scratch_operands = 4 : i64, tpu.core_type = #tpu.core_type<tc>, window_params = [{transform_indices = @transform_0, window_bounds = array<i64: 8, 1, 2, 32>}, {transform_indices = @transform_1, window_bounds = array<i64: 8, 1, 2, 32>}, {transform_indices = @transform_2, window_bounds = array<i64: 8, 1, 2, 32>}, {transform_indices = @transform_3, window_bounds = array<i64: 8, 1, 2, 32>}]} {
    %c0_i32 = arith.constant 0 : i32
    %0 = arith.cmpi eq, %arg2, %c0_i32 : i32
    %1 = arith.extui %0 : i1 to i32
    %c0_i32_0 = arith.constant 0 : i32
    %2 = arith.cmpi ne, %1, %c0_i32_0 : i32
    scf.if %2 {
      %cst_66 = arith.constant 0xFF800000 : f32
      %82 = vector.broadcast %cst_66 : f32 to vector<2x8x1xf32>
      %c0_67 = arith.constant 0 : index
      %c0_68 = arith.constant 0 : index
      %c0_69 = arith.constant 0 : index
      %83 = vector.load %arg8[%c0_67, %c0_68, %c0_69] : memref<2x8x1xf32, #tpu.memory_space<vmem>>, vector<2x8x1xf32>
      tpu.vector_store %arg8[%c0_67, %c0_68, %c0_69], %82 {strides = array<i32>} : memref<2x8x1xf32, #tpu.memory_space<vmem>>, vector<2x8x1xf32>,
      %cst_70 = arith.constant 0.000000e+00 : f32
      %84 = vector.broadcast %cst_70 : f32 to vector<2x8x1xf32>
      %c0_71 = arith.constant 0 : index
      %c0_72 = arith.constant 0 : index
      %c0_73 = arith.constant 0 : index
      %85 = vector.load %arg9[%c0_71, %c0_72, %c0_73] : memref<2x8x1xf32, #tpu.memory_space<vmem>>, vector<2x8x1xf32>
      tpu.vector_store %arg9[%c0_71, %c0_72, %c0_73], %84 {strides = array<i32>} : memref<2x8x1xf32, #tpu.memory_space<vmem>>, vector<2x8x1xf32>,
      %cst_74 = arith.constant 0.000000e+00 : f32
      %86 = vector.broadcast %cst_74 : f32 to vector<2x8x32xf32>
      %c0_75 = arith.constant 0 : index
      %c0_76 = arith.constant 0 : index
      %c0_77 = arith.constant 0 : index
      %87 = vector.load %arg10[%c0_75, %c0_76, %c0_77] : memref<2x8x32xf32, #tpu.memory_space<vmem>>, vector<2x8x32xf32>
      tpu.vector_store %arg10[%c0_75, %c0_76, %c0_77], %86 {strides = array<i32>} : memref<2x8x32xf32, #tpu.memory_space<vmem>>, vector<2x8x32xf32>,
      %c0_78 = arith.constant 0 : index
      %c0_79 = arith.constant 0 : index
      %c0_80 = arith.constant 0 : index
      %c0_81 = arith.constant 0 : index
      %88 = vector.load %arg3[%c0_78, %c0_79, %c0_80, %c0_81] : memref<8x1x2x32xf32, #tpu.memory_space<vmem>>, vector<8x1x1x32xf32>
      %89 = vector.shape_cast %88 : vector<8x1x1x32xf32> to vector<8x32xf32>
      %cst_82 = arith.constant 0.176776692 : f32
      %90 = vector.broadcast %cst_82 : f32 to vector<8x32xf32>
      %91 = arith.mulf %89, %90 : vector<8x32xf32>
      %c0_83 = arith.constant 0 : index
      %c0_84 = arith.constant 0 : index
      %c0_85 = arith.constant 0 : index
      %92 = vector.load %arg7[%c0_83, %c0_84, %c0_85] : memref<2x8x32xf32, #tpu.memory_space<vmem>>, vector<1x8x32xf32>
      %93 = vector.shape_cast %92 : vector<1x8x32xf32> to vector<8x32xf32>
      %94 = vector.shape_cast %91 : vector<8x32xf32> to vector<1x8x32xf32>
      tpu.vector_store %arg7[%c0_83, %c0_84, %c0_85], %94 {strides = array<i32>} : memref<2x8x32xf32, #tpu.memory_space<vmem>>, vector<1x8x32xf32>,
      %c0_86 = arith.constant 0 : index
      %c0_87 = arith.constant 0 : index
      %c1_88 = arith.constant 1 : index
      %c0_89 = arith.constant 0 : index
      %95 = vector.load %arg3[%c0_86, %c0_87, %c1_88, %c0_89] : memref<8x1x2x32xf32, #tpu.memory_space<vmem>>, vector<8x1x1x32xf32>
      %96 = vector.shape_cast %95 : vector<8x1x1x32xf32> to vector<8x32xf32>
      %cst_90 = arith.constant 0.176776692 : f32
      %97 = vector.broadcast %cst_90 : f32 to vector<8x32xf32>
      %98 = arith.mulf %96, %97 : vector<8x32xf32>
      %c1_91 = arith.constant 1 : index
      %c0_92 = arith.constant 0 : index
      %c0_93 = arith.constant 0 : index
      %99 = vector.load %arg7[%c1_91, %c0_92, %c0_93] : memref<2x8x32xf32, #tpu.memory_space<vmem>>, vector<1x8x32xf32>
      %100 = vector.shape_cast %99 : vector<1x8x32xf32> to vector<8x32xf32>
      %101 = vector.shape_cast %98 : vector<8x32xf32> to vector<1x8x32xf32>
      tpu.vector_store %arg7[%c1_91, %c0_92, %c0_93], %101 {strides = array<i32>} : memref<2x8x32xf32, #tpu.memory_space<vmem>>, vector<1x8x32xf32>,
    } else {
    }
    %c0 = arith.constant 0 : index
    %c0_1 = arith.constant 0 : index
    %c0_2 = arith.constant 0 : index
    %3 = vector.load %arg7[%c0, %c0_1, %c0_2] : memref<2x8x32xf32, #tpu.memory_space<vmem>>, vector<1x8x32xf32>
    %4 = vector.shape_cast %3 : vector<1x8x32xf32> to vector<8x32xf32>
    %c0_3 = arith.constant 0 : index
    %c0_4 = arith.constant 0 : index
    %c0_5 = arith.constant 0 : index
    %c0_6 = arith.constant 0 : index
    %5 = vector.load %arg4[%c0_3, %c0_4, %c0_5, %c0_6] : memref<8x1x2x32xf32, #tpu.memory_space<vmem>>, vector<8x1x1x32xf32>
    %6 = vector.shape_cast %5 : vector<8x1x1x32xf32> to vector<8x32xf32>
    %cst = arith.constant dense<0.000000e+00> : vector<8x8xf32>
    %7 = tpu.matmul %4, %6, %cst {dimension_numbers = #tpu.dot_dimension_numbers<[1], [1], [0], [0], [0, 0, 1, 0], [], []>} : vector<8x32xf32>, vector<8x32xf32>, vector<8x8xf32> -> vector<8x8xf32>
    %c0_7 = arith.constant 0 : index
    %c0_8 = arith.constant 0 : index
    %c0_9 = arith.constant 0 : index
    %8 = vector.load %arg8[%c0_7, %c0_8, %c0_9] : memref<2x8x1xf32, #tpu.memory_space<vmem>>, vector<1x8x1xf32>
    %9 = vector.shape_cast %8 : vector<1x8x1xf32> to vector<8x1xf32>
    %cst_10 = arith.constant dense<0xFF800000> : vector<8xf32>
    %10 = vector.multi_reduction <maximumf>, %7, %cst_10 [1] : vector<8x8xf32> to vector<8xf32>
    %11 = vector.shape_cast %10 : vector<8xf32> to vector<8x1xf32>
    %12 = arith.maximumf %9, %11 : vector<8x1xf32>
    %13 = arith.subf %9, %12 : vector<8x1xf32>
    %14 = math.exp %13 : vector<8x1xf32>
    %15 = vector.broadcast %12 : vector<8x1xf32> to vector<8x8xf32>
    %16 = arith.subf %7, %15 : vector<8x8xf32>
    %17 = math.exp %16 : vector<8x8xf32>
    %c0_11 = arith.constant 0 : index
    %c0_12 = arith.constant 0 : index
    %c0_13 = arith.constant 0 : index
    %18 = vector.load %arg9[%c0_11, %c0_12, %c0_13] : memref<2x8x1xf32, #tpu.memory_space<vmem>>, vector<1x8x1xf32>
    %19 = vector.shape_cast %18 : vector<1x8x1xf32> to vector<8x1xf32>
    %20 = arith.mulf %14, %19 : vector<8x1xf32>
    %cst_14 = arith.constant dense<0.000000e+00> : vector<8xf32>
    %21 = vector.multi_reduction <add>, %17, %cst_14 [1] : vector<8x8xf32> to vector<8xf32>
    %22 = vector.shape_cast %21 : vector<8xf32> to vector<8x1xf32>
    %23 = arith.addf %20, %22 : vector<8x1xf32>
    %c0_15 = arith.constant 0 : index
    %c0_16 = arith.constant 0 : index
    %c0_17 = arith.constant 0 : index
    %24 = vector.load %arg9[%c0_15, %c0_16, %c0_17] : memref<2x8x1xf32, #tpu.memory_space<vmem>>, vector<1x8x1xf32>
    %25 = vector.shape_cast %24 : vector<1x8x1xf32> to vector<8x1xf32>
    %26 = vector.shape_cast %23 : vector<8x1xf32> to vector<1x8x1xf32>
    tpu.vector_store %arg9[%c0_15, %c0_16, %c0_17], %26 {strides = array<i32>} : memref<2x8x1xf32, #tpu.memory_space<vmem>>, vector<1x8x1xf32>,
    %c0_18 = arith.constant 0 : index
    %c0_19 = arith.constant 0 : index
    %c0_20 = arith.constant 0 : index
    %27 = vector.load %arg10[%c0_18, %c0_19, %c0_20] : memref<2x8x32xf32, #tpu.memory_space<vmem>>, vector<1x8x32xf32>
    %28 = vector.shape_cast %27 : vector<1x8x32xf32> to vector<8x32xf32>
    %29 = vector.broadcast %14 : vector<8x1xf32> to vector<8x32xf32>
    %30 = arith.mulf %29, %28 : vector<8x32xf32>
    %c0_21 = arith.constant 0 : index
    %c0_22 = arith.constant 0 : index
    %c0_23 = arith.constant 0 : index
    %c0_24 = arith.constant 0 : index
    %31 = vector.load %arg5[%c0_21, %c0_22, %c0_23, %c0_24] : memref<8x1x2x32xf32, #tpu.memory_space<vmem>>, vector<8x1x1x32xf32>
    %32 = vector.shape_cast %31 : vector<8x1x1x32xf32> to vector<8x32xf32>
    %cst_25 = arith.constant dense<0.000000e+00> : vector<8x32xf32>
    %33 = tpu.matmul %17, %32, %cst_25 {dimension_numbers = #tpu.dot_dimension_numbers<[1], [0], [0], [1], [0, 0, 1, 1], [], []>} : vector<8x8xf32>, vector<8x32xf32>, vector<8x32xf32> -> vector<8x32xf32>
    %34 = arith.addf %30, %33 : vector<8x32xf32>
    %c0_26 = arith.constant 0 : index
    %c0_27 = arith.constant 0 : index
    %c0_28 = arith.constant 0 : index
    %35 = vector.load %arg10[%c0_26, %c0_27, %c0_28] : memref<2x8x32xf32, #tpu.memory_space<vmem>>, vector<1x8x32xf32>
    %36 = vector.shape_cast %35 : vector<1x8x32xf32> to vector<8x32xf32>
    %37 = vector.shape_cast %34 : vector<8x32xf32> to vector<1x8x32xf32>
    tpu.vector_store %arg10[%c0_26, %c0_27, %c0_28], %37 {strides = array<i32>} : memref<2x8x32xf32, #tpu.memory_space<vmem>>, vector<1x8x32xf32>,
    %c0_29 = arith.constant 0 : index
    %c0_30 = arith.constant 0 : index
    %c0_31 = arith.constant 0 : index
    %38 = vector.load %arg8[%c0_29, %c0_30, %c0_31] : memref<2x8x1xf32, #tpu.memory_space<vmem>>, vector<1x8x1xf32>
    %39 = vector.shape_cast %38 : vector<1x8x1xf32> to vector<8x1xf32>
    %40 = vector.shape_cast %12 : vector<8x1xf32> to vector<1x8x1xf32>
    tpu.vector_store %arg8[%c0_29, %c0_30, %c0_31], %40 {strides = array<i32>} : memref<2x8x1xf32, #tpu.memory_space<vmem>>, vector<1x8x1xf32>,
    %c1 = arith.constant 1 : index
    %c0_32 = arith.constant 0 : index
    %c0_33 = arith.constant 0 : index
    %41 = vector.load %arg7[%c1, %c0_32, %c0_33] : memref<2x8x32xf32, #tpu.memory_space<vmem>>, vector<1x8x32xf32>
    %42 = vector.shape_cast %41 : vector<1x8x32xf32> to vector<8x32xf32>
    %c0_34 = arith.constant 0 : index
    %c0_35 = arith.constant 0 : index
    %c1_36 = arith.constant 1 : index
    %c0_37 = arith.constant 0 : index
    %43 = vector.load %arg4[%c0_34, %c0_35, %c1_36, %c0_37] : memref<8x1x2x32xf32, #tpu.memory_space<vmem>>, vector<8x1x1x32xf32>
    %44 = vector.shape_cast %43 : vector<8x1x1x32xf32> to vector<8x32xf32>
    %cst_38 = arith.constant dense<0.000000e+00> : vector<8x8xf32>
    %45 = tpu.matmul %42, %44, %cst_38 {dimension_numbers = #tpu.dot_dimension_numbers<[1], [1], [0], [0], [0, 0, 1, 0], [], []>} : vector<8x32xf32>, vector<8x32xf32>, vector<8x8xf32> -> vector<8x8xf32>
    %c1_39 = arith.constant 1 : index
    %c0_40 = arith.constant 0 : index
    %c0_41 = arith.constant 0 : index
    %46 = vector.load %arg8[%c1_39, %c0_40, %c0_41] : memref<2x8x1xf32, #tpu.memory_space<vmem>>, vector<1x8x1xf32>
    %47 = vector.shape_cast %46 : vector<1x8x1xf32> to vector<8x1xf32>
    %cst_42 = arith.constant dense<0xFF800000> : vector<8xf32>
    %48 = vector.multi_reduction <maximumf>, %45, %cst_42 [1] : vector<8x8xf32> to vector<8xf32>
    %49 = vector.shape_cast %48 : vector<8xf32> to vector<8x1xf32>
    %50 = arith.maximumf %47, %49 : vector<8x1xf32>
    %51 = arith.subf %47, %50 : vector<8x1xf32>
    %52 = math.exp %51 : vector<8x1xf32>
    %53 = vector.broadcast %50 : vector<8x1xf32> to vector<8x8xf32>
    %54 = arith.subf %45, %53 : vector<8x8xf32>
    %55 = math.exp %54 : vector<8x8xf32>
    %c1_43 = arith.constant 1 : index
    %c0_44 = arith.constant 0 : index
    %c0_45 = arith.constant 0 : index
    %56 = vector.load %arg9[%c1_43, %c0_44, %c0_45] : memref<2x8x1xf32, #tpu.memory_space<vmem>>, vector<1x8x1xf32>
    %57 = vector.shape_cast %56 : vector<1x8x1xf32> to vector<8x1xf32>
    %58 = arith.mulf %52, %57 : vector<8x1xf32>
    %cst_46 = arith.constant dense<0.000000e+00> : vector<8xf32>
    %59 = vector.multi_reduction <add>, %55, %cst_46 [1] : vector<8x8xf32> to vector<8xf32>
    %60 = vector.shape_cast %59 : vector<8xf32> to vector<8x1xf32>
    %61 = arith.addf %58, %60 : vector<8x1xf32>
    %c1_47 = arith.constant 1 : index
    %c0_48 = arith.constant 0 : index
    %c0_49 = arith.constant 0 : index
    %62 = vector.load %arg9[%c1_47, %c0_48, %c0_49] : memref<2x8x1xf32, #tpu.memory_space<vmem>>, vector<1x8x1xf32>
    %63 = vector.shape_cast %62 : vector<1x8x1xf32> to vector<8x1xf32>
    %64 = vector.shape_cast %61 : vector<8x1xf32> to vector<1x8x1xf32>
    tpu.vector_store %arg9[%c1_47, %c0_48, %c0_49], %64 {strides = array<i32>} : memref<2x8x1xf32, #tpu.memory_space<vmem>>, vector<1x8x1xf32>,
    %c1_50 = arith.constant 1 : index
    %c0_51 = arith.constant 0 : index
    %c0_52 = arith.constant 0 : index
    %65 = vector.load %arg10[%c1_50, %c0_51, %c0_52] : memref<2x8x32xf32, #tpu.memory_space<vmem>>, vector<1x8x32xf32>
    %66 = vector.shape_cast %65 : vector<1x8x32xf32> to vector<8x32xf32>
    %67 = vector.broadcast %52 : vector<8x1xf32> to vector<8x32xf32>
    %68 = arith.mulf %67, %66 : vector<8x32xf32>
    %c0_53 = arith.constant 0 : index
    %c0_54 = arith.constant 0 : index
    %c1_55 = arith.constant 1 : index
    %c0_56 = arith.constant 0 : index
    %69 = vector.load %arg5[%c0_53, %c0_54, %c1_55, %c0_56] : memref<8x1x2x32xf32, #tpu.memory_space<vmem>>, vector<8x1x1x32xf32>
    %70 = vector.shape_cast %69 : vector<8x1x1x32xf32> to vector<8x32xf32>
    %cst_57 = arith.constant dense<0.000000e+00> : vector<8x32xf32>
    %71 = tpu.matmul %55, %70, %cst_57 {dimension_numbers = #tpu.dot_dimension_numbers<[1], [0], [0], [1], [0, 0, 1, 1], [], []>} : vector<8x8xf32>, vector<8x32xf32>, vector<8x32xf32> -> vector<8x32xf32>
    %72 = arith.addf %68, %71 : vector<8x32xf32>
    %c1_58 = arith.constant 1 : index
    %c0_59 = arith.constant 0 : index
    %c0_60 = arith.constant 0 : index
    %73 = vector.load %arg10[%c1_58, %c0_59, %c0_60] : memref<2x8x32xf32, #tpu.memory_space<vmem>>, vector<1x8x32xf32>
    %74 = vector.shape_cast %73 : vector<1x8x32xf32> to vector<8x32xf32>
    %75 = vector.shape_cast %72 : vector<8x32xf32> to vector<1x8x32xf32>
    tpu.vector_store %arg10[%c1_58, %c0_59, %c0_60], %75 {strides = array<i32>} : memref<2x8x32xf32, #tpu.memory_space<vmem>>, vector<1x8x32xf32>,
    %c1_61 = arith.constant 1 : index
    %c0_62 = arith.constant 0 : index
    %c0_63 = arith.constant 0 : index
    %76 = vector.load %arg8[%c1_61, %c0_62, %c0_63] : memref<2x8x1xf32, #tpu.memory_space<vmem>>, vector<1x8x1xf32>
    %77 = vector.shape_cast %76 : vector<1x8x1xf32> to vector<8x1xf32>
    %78 = vector.shape_cast %50 : vector<8x1xf32> to vector<1x8x1xf32>
    tpu.vector_store %arg8[%c1_61, %c0_62, %c0_63], %78 {strides = array<i32>} : memref<2x8x1xf32, #tpu.memory_space<vmem>>, vector<1x8x1xf32>,
    %c0_i32_64 = arith.constant 0 : i32
    %79 = arith.cmpi eq, %arg2, %c0_i32_64 : i32
    %80 = arith.extui %79 : i1 to i32
    %c0_i32_65 = arith.constant 0 : i32
    %81 = arith.cmpi ne, %80, %c0_i32_65 : i32
    scf.if %81 {
      %c0_66 = arith.constant 0 : index
      %c0_67 = arith.constant 0 : index
      %c0_68 = arith.constant 0 : index
      %82 = vector.load %arg10[%c0_66, %c0_67, %c0_68] : memref<2x8x32xf32, #tpu.memory_space<vmem>>, vector<1x8x32xf32>
      %83 = vector.shape_cast %82 : vector<1x8x32xf32> to vector<8x32xf32>
      %c0_69 = arith.constant 0 : index
      %c0_70 = arith.constant 0 : index
      %c0_71 = arith.constant 0 : index
      %84 = vector.load %arg9[%c0_69, %c0_70, %c0_71] : memref<2x8x1xf32, #tpu.memory_space<vmem>>, vector<1x8x1xf32>
      %85 = vector.shape_cast %84 : vector<1x8x1xf32> to vector<8x1xf32>
      %86 = vector.broadcast %85 : vector<8x1xf32> to vector<8x32xf32>
      %87 = arith.divf %83, %86 : vector<8x32xf32>
      %c0_72 = arith.constant 0 : index
      %c0_73 = arith.constant 0 : index
      %c0_74 = arith.constant 0 : index
      %c0_75 = arith.constant 0 : index
      %88 = vector.load %arg6[%c0_72, %c0_73, %c0_74, %c0_75] : memref<8x1x2x32xf32, #tpu.memory_space<vmem>>, vector<8x1x1x32xf32>
      %89 = vector.shape_cast %88 : vector<8x1x1x32xf32> to vector<8x32xf32>
      %90 = vector.shape_cast %87 : vector<8x32xf32> to vector<8x1x1x32xf32>
      tpu.vector_store %arg6[%c0_72, %c0_73, %c0_74, %c0_75], %90 {strides = array<i32>} : memref<8x1x2x32xf32, #tpu.memory_space<vmem>>, vector<8x1x1x32xf32>,
      %c1_76 = arith.constant 1 : index
      %c0_77 = arith.constant 0 : index
      %c0_78 = arith.constant 0 : index
      %91 = vector.load %arg10[%c1_76, %c0_77, %c0_78] : memref<2x8x32xf32, #tpu.memory_space<vmem>>, vector<1x8x32xf32>
      %92 = vector.shape_cast %91 : vector<1x8x32xf32> to vector<8x32xf32>
      %c1_79 = arith.constant 1 : index
      %c0_80 = arith.constant 0 : index
      %c0_81 = arith.constant 0 : index
      %93 = vector.load %arg9[%c1_79, %c0_80, %c0_81] : memref<2x8x1xf32, #tpu.memory_space<vmem>>, vector<1x8x1xf32>
      %94 = vector.shape_cast %93 : vector<1x8x1xf32> to vector<8x1xf32>
      %95 = vector.broadcast %94 : vector<8x1xf32> to vector<8x32xf32>
      %96 = arith.divf %92, %95 : vector<8x32xf32>
      %c0_82 = arith.constant 0 : index
      %c0_83 = arith.constant 0 : index
      %c1_84 = arith.constant 1 : index
      %c0_85 = arith.constant 0 : index
      %97 = vector.load %arg6[%c0_82, %c0_83, %c1_84, %c0_85] : memref<8x1x2x32xf32, #tpu.memory_space<vmem>>, vector<8x1x1x32xf32>
      %98 = vector.shape_cast %97 : vector<8x1x1x32xf32> to vector<8x32xf32>
      %99 = vector.shape_cast %96 : vector<8x32xf32> to vector<8x1x1x32xf32>
      tpu.vector_store %arg6[%c0_82, %c0_83, %c1_84, %c0_85], %99 {strides = array<i32>} : memref<8x1x2x32xf32, #tpu.memory_space<vmem>>, vector<8x1x1x32xf32>,
    } else {
    }
    return
  }
  func.func @transform_0(%arg0: i32, %arg1: i32, %arg2: i32) -> (i32, i32, i32, i32) {
    %c0_i32 = arith.constant 0 : i32
    %c0_i32_0 = arith.constant 0 : i32
    %c0_i32_1 = arith.constant 0 : i32
    return %arg1, %arg0, %c0_i32, %c0_i32_0 : i32, i32, i32, i32
  }
  func.func @transform_1(%arg0: i32, %arg1: i32, %arg2: i32) -> (i32, i32, i32, i32) {
    %c0_i32 = arith.constant 0 : i32
    %c0_i32_0 = arith.constant 0 : i32
    %c0_i32_1 = arith.constant 0 : i32
    return %arg2, %arg0, %c0_i32, %c0_i32_0 : i32, i32, i32, i32
  }
  func.func @transform_2(%arg0: i32, %arg1: i32, %arg2: i32) -> (i32, i32, i32, i32) {
    %c0_i32 = arith.constant 0 : i32
    %c0_i32_0 = arith.constant 0 : i32
    %c0_i32_1 = arith.constant 0 : i32
    return %arg2, %arg0, %c0_i32, %c0_i32_0 : i32, i32, i32, i32
  }
  func.func @transform_3(%arg0: i32, %arg1: i32, %arg2: i32) -> (i32, i32, i32, i32) {
    %c0_i32 = arith.constant 0 : i32
    %c0_i32_0 = arith.constant 0 : i32
    %c0_i32_1 = arith.constant 0 : i32
    return %arg1, %arg0, %c0_i32, %c0_i32_0 : i32, i32, i32, i32
  }
}

</mosaic_0001>

<llo_original>
// kernel: tpu_custom_call.1
$region0: #{tpu_custom_call.1}
  #allocation0 [shape = 'u32[]', space=smem, size = 0x4, offset = 0x4, fixed_abs, tag = 'smem constant byte address 0x4 - core index']
  #allocation1 [shape = 'u32[144,128]{1,0:T(1,128)}', space=vmem, size = 0x12000, scoped, tag = 'internal scratch']
  #allocation2 [shape = 'f32[2,8,32]{2,1,0:T(8,128)}', space=vmem, size = 0x2000, scoped, tag = 'scratch operand']
  #allocation3 [shape = 'f32[2,8,1]{2,1,0:T(8,128)}', space=vmem, size = 0x2000, scoped, tag = 'scratch operand']
  #allocation4 [shape = 'f32[2,8,1]{2,1,0:T(8,128)}', space=vmem, size = 0x2000, scoped, tag = 'scratch operand']
  #allocation5 [shape = 'f32[2,8,32]{2,1,0:T(8,128)}', space=vmem, size = 0x2000, scoped, tag = 'scratch operand']
  %s0 = inlined_call_operand.hbm [shape: f32[8,2,2,32], index: 0, kind: input, shape index: {}]
  %s1 = inlined_call_operand.hbm [shape: f32[8,2,2,32], index: 1, kind: input, shape index: {}]
  %s2 = inlined_call_operand.hbm [shape: f32[8,2,2,32], index: 2, kind: input, shape index: {}]
  %s3 = inlined_call_operand.hbm [shape: f32[8,2,2,32], index: 3, kind: output, shape index: {}]
  %s4 = sld [smem:[#allocation0]]
  $region65: #{tpu_custom_call.1} parent=0
    _
  %s6 = ssub.s32 1, %s4
  %s7 = scalar_select 0, %s6, %s4
  $region1: #{tpu_custom_call.1} parent=0
    #allocation6 [shape = 'u8[16384]{0}', space=vmem, size = 0x4000, scoped, tag = 'input window, operand 0']
    #allocation7 [shape = 's32[2]{0}', space=sflag, size = 0x8, scoped, tag = 'scoped memory for tpu_custom_call.1']
    #allocation8 [shape = 's32[2]{0}', space=sflag, size = 0x8, scoped, tag = 'scoped memory for tpu_custom_call.1']
    #allocation9 [shape = 'u8[16384]{0}', space=vmem, size = 0x4000, scoped, tag = 'input window, operand 1']
    #allocation10 [shape = 's32[2]{0}', space=sflag, size = 0x8, scoped, tag = 'scoped memory for tpu_custom_call.1']
    #allocation11 [shape = 'u8[16384]{0}', space=vmem, size = 0x4000, scoped, tag = 'input window, operand 2']
    #allocation12 [shape = 'u8[16384]{0}', space=vmem, size = 0x4000, scoped, tag = 'output window, operand 0']
    %8 = vsyncpa [#allocation7], 0
    %s9 = scalar_lea.sflag [#allocation7], 1
    %10 = vsyncpa %s9, 0
    %11 = vsyncpa [#allocation10], 0
    %s12 = scalar_lea.sflag [#allocation10], 1
    %13 = vsyncpa %s12, 0
    %14 = vsyncpa [#allocation8], 0
    %s15 = scalar_lea.sflag [#allocation8], 1
    %16 = vsyncpa %s15, 0
    loop: start=0, step=1, limit=4
    $region2: #{tpu_custom_call.1} parent=1 // loop_pre_header
      _
    $region3: #{tpu_custom_call.1} parent=1 // loop_header
      %s18 = sphi 0, %s22
      %p19 = scmp.ge.s32.totalorder %s18, 4
      %s25 = sphi 0, %s44
      %s26 = sphi 0, %s40
      %s27 = sphi 0, %s36
      %s28 = sphi 0, %s25
      %s29 = sphi 0, %s26
      %s30 = sphi 0, %s27
      %s31 = sphi 0, %s28
      %s32 = sphi 0, %s29
      %s33 = sphi 0, %s30
      %s49 = sphi 0, %s51
      %s52 = sphi 0, %s49
      %s53 = sphi 0, %s52
      %s69 = sphi 0, %s53
      %s77 = sphi 0, %s79
      %s80 = sphi 0, %s77
      %s81 = sphi 0, %s80
      %s97 = sphi 0, %s81
      %s105 = sphi 0, %s107
      %s108 = sphi 0, %s105
      %s109 = sphi 0, %s108
      %s125 = sphi 0, %s109
      %s133 = sphi 0, %s135
      %s136 = sphi 0, %s133
      %s137 = sphi 0, %s136
      %s153 = sphi 0, %s137
    $region4: #{tpu_custom_call.1} parent=1 // loop_header_branch
      %21 = sbr.rel (%p19) target = $region8
    $region5: #{tpu_custom_call.1} parent=1 // loop_body
      %s23 = ssub.s32 %s18, 1
      %s24 = ssub.s32 %s18, 2
      %s34 = sadd.s32 1, %s27
      %p35 = scmp.ge.s32.totalorder %s34, 1
      %s36 = scalar_select %p35, 0, %s34
      %s37 = sadd.s32 1, %s26
      %s38 = scalar_select %p35, %s37, %s26
      %p39 = scmp.ge.s32.totalorder %s38, 1
      %s40 = scalar_select %p39, 0, %s38
      %s41 = sadd.s32 1, %s25
      %s42 = scalar_select %p39, %s41, %s25
      %p43 = scmp.ge.s32.totalorder %s42, 2
      %s44 = scalar_select %p43, 0, %s42
      %s45 = ssub.s32 %s26, %s40
      %s46 = ssub.s32 %s25, %s44
      %s47 = sor.u32 %s45, %s46
      %p48 = scmp.eq.s32.totalorder %s47, 0
      %s50 = sadd.s32 %s49, 1
      %s51 = scalar_select %p48, %s49, %s50
      %p54 = pneg %p48
      %p55 = scmp.eq.s32.totalorder %s18, 1
      %p56 = por %p54, %p55
      %p57 = scmp.ne.s32.totalorder %s49, %s52
      %p58 = scmp.eq.s32.totalorder %s18, 0
      %p59 = por %p57, %p58
      %p60 = scmp.ne.s32.totalorder %s49, %s52
      %p61 = scmp.eq.s32.totalorder %s23, 1
      %p62 = por %p60, %p61
      %p63 = scmp.ne.s32.totalorder %s52, %s53
      %p64 = scmp.eq.s32.totalorder %s23, 0
      %p65 = por %p63, %p64
      %p66 = scmp.ne.s32.totalorder %s52, %s53
      %p67 = scmp.eq.s32.totalorder %s24, 1
      %p68 = por %p66, %p67
      %p70 = scmp.ne.s32.totalorder %s53, %s69
      %p71 = scmp.eq.s32.totalorder %s24, 0
      %p72 = por %p70, %p71
      %s73 = ssub.s32 %s27, %s36
      %s74 = ssub.s32 %s25, %s44
      %s75 = sor.u32 %s73, %s74
      %p76 = scmp.eq.s32.totalorder %s75, 0
      %s78 = sadd.s32 %s77, 1
      %s79 = scalar_select %p76, %s77, %s78
      %p82 = pneg %p76
      %p83 = scmp.eq.s32.totalorder %s18, 1
      %p84 = por %p82, %p83
      %p85 = scmp.ne.s32.totalorder %s77, %s80
      %p86 = scmp.eq.s32.totalorder %s18, 0
      %p87 = por %p85, %p86
      %p88 = scmp.ne.s32.totalorder %s77, %s80
      %p89 = scmp.eq.s32.totalorder %s23, 1
      %p90 = por %p88, %p89
      %p91 = scmp.ne.s32.totalorder %s80, %s81
      %p92 = scmp.eq.s32.totalorder %s23, 0
      %p93 = por %p91, %p92
      %p94 = scmp.ne.s32.totalorder %s80, %s81
      %p95 = scmp.eq.s32.totalorder %s24, 1
      %p96 = por %p94, %p95
      %p98 = scmp.ne.s32.totalorder %s81, %s97
      %p99 = scmp.eq.s32.totalorder %s24, 0
      %p100 = por %p98, %p99
      %s101 = ssub.s32 %s27, %s36
      %s102 = ssub.s32 %s25, %s44
      %s103 = sor.u32 %s101, %s102
      %p104 = scmp.eq.s32.totalorder %s103, 0
      %s106 = sadd.s32 %s105, 1
      %s107 = scalar_select %p104, %s105, %s106
      %p110 = pneg %p104
      %p111 = scmp.eq.s32.totalorder %s18, 1
      %p112 = por %p110, %p111
      %p113 = scmp.ne.s32.totalorder %s105, %s108
      %p114 = scmp.eq.s32.totalorder %s18, 0
      %p115 = por %p113, %p114
      %p116 = scmp.ne.s32.totalorder %s105, %s108
      %p117 = scmp.eq.s32.totalorder %s23, 1
      %p118 = por %p116, %p117
      %p119 = scmp.ne.s32.totalorder %s108, %s109
      %p120 = scmp.eq.s32.totalorder %s23, 0
      %p121 = por %p119, %p120
      %p122 = scmp.ne.s32.totalorder %s108, %s109
      %p123 = scmp.eq.s32.totalorder %s24, 1
      %p124 = por %p122, %p123
      %p126 = scmp.ne.s32.totalorder %s109, %s125
      %p127 = scmp.eq.s32.totalorder %s24, 0
      %p128 = por %p126, %p127
      %s129 = ssub.s32 %s26, %s40
      %s130 = ssub.s32 %s25, %s44
      %s131 = sor.u32 %s129, %s130
      %p132 = scmp.eq.s32.totalorder %s131, 0
      %s134 = sadd.s32 %s133, 1
      %s135 = scalar_select %p132, %s133, %s134
      %p138 = pneg %p132
      %p139 = scmp.eq.s32.totalorder %s18, 1
      %p140 = por %p138, %p139
      %p141 = scmp.ne.s32.totalorder %s133, %s136
      %p142 = scmp.eq.s32.totalorder %s18, 0
      %p143 = por %p141, %p142
      %p144 = scmp.ne.s32.totalorder %s133, %s136
      %p145 = scmp.eq.s32.totalorder %s23, 1
      %p146 = por %p144, %p145
      %p147 = scmp.ne.s32.totalorder %s136, %s137
      %p148 = scmp.eq.s32.totalorder %s23, 0
      %p149 = por %p147, %p148
      %p150 = scmp.ne.s32.totalorder %s136, %s137
      %p151 = scmp.eq.s32.totalorder %s24, 1
      %p152 = por %p150, %p151
      %p154 = scmp.ne.s32.totalorder %s137, %s153
      %p155 = scmp.eq.s32.totalorder %s24, 0
      %p156 = por %p154, %p155
      %p157 = scmp.le.s32.totalorder 1, %s18
      %p158 = scmp.lt.s32.totalorder %s18, 3
      %p159 = pnand %p157, %p158
      %p160 = pneg %p159
      // Predicated region
      $region9: #{tpu_custom_call.1} parent=5 // pred_check
        _
      $region10: #{tpu_custom_call.1} parent=5 // pred_check_branch
        %162 = sbr.rel (%p159) target = $region12
      $region11: #{tpu_custom_call.1} parent=5 // pred_region
        %s163 = ssub.s32 %s18, 1
      $region12: #{tpu_custom_call.1} parent=5 // pred_fallthru
        _
      %p164 = scmp.lt.s32.totalorder %s18, 2
      // Predicated region
      $region13: #{tpu_custom_call.1} parent=5 // pred_check
        %p165 = pneg %p164
      $region14: #{tpu_custom_call.1} parent=5 // pred_check_branch
        %167 = sbr.rel (%p165) target = $region16
      $region15: #{tpu_custom_call.1} parent=5 // pred_region
        // Predicated region
        $region17: #{tpu_custom_call.1} parent=15 // pred_check
          %p168 = pneg %p59
        $region18: #{tpu_custom_call.1} parent=15 // pred_check_branch
          %170 = sbr.rel (%p168) target = $region20
        $region19: #{tpu_custom_call.1} parent=15 // pred_region
          %s171 = sand.u32 %s49, 1
          %s172 = scalar_lea.sflag [#allocation7], %s171
          %s173 = sand.u32 %s49, 1
          %s174 = smul.addr %s173, 16
          %s175 = scalar_lea.vmem [#allocation6], %s174
          %s176 = smul.u32 8, %s26
          %s178 = ssub.s32 256, 256
          %179 = vsyncadd %s172, %s178
          %s180 = smul.addr %s176, 2
          %s181 = sadd.s32 %s25, %s180
          %s182 = smul.addr %s181, 32
          %s183 = scalar_lea.hbm %s0, %s182
          %s184 = sshll.u32 %s175, 4
          %s185 = int_to_ptr.vmem [resolvable:$true] %s184
          %190 = dma.hbm_to_vmem [thread:$0]  %s183, 256, %s185, %s172, 64, 32, 2
        $region20: #{tpu_custom_call.1} parent=15 // pred_fallthru
          _
        // Predicated region
        $region21: #{tpu_custom_call.1} parent=15 // pred_check
          %p191 = pneg %p87
        $region22: #{tpu_custom_call.1} parent=15 // pred_check_branch
          %193 = sbr.rel (%p191) target = $region24
        $region23: #{tpu_custom_call.1} parent=15 // pred_region
          %s194 = sand.u32 %s18, 1
          %s195 = scalar_lea.sflag [#allocation10], %s194
          %s196 = sand.u32 %s77, 1
          %s197 = smul.addr %s196, 16
          %s198 = scalar_lea.vmem [#allocation9], %s197
          %s199 = smul.u32 8, %s27
          %s201 = ssub.s32 256, 256
          %202 = vsyncadd %s195, %s201
          %s203 = smul.addr %s199, 2
          %s204 = sadd.s32 %s25, %s203
          %s205 = smul.addr %s204, 32
          %s206 = scalar_lea.hbm %s1, %s205
          %s207 = sshll.u32 %s198, 4
          %s208 = int_to_ptr.vmem [resolvable:$true] %s207
          %213 = dma.hbm_to_vmem [thread:$0]  %s206, 256, %s208, %s195, 64, 32, 2
        $region24: #{tpu_custom_call.1} parent=15 // pred_fallthru
          _
        // Predicated region
        $region25: #{tpu_custom_call.1} parent=15 // pred_check
          %p214 = pneg %p115
        $region26: #{tpu_custom_call.1} parent=15 // pred_check_branch
          %216 = sbr.rel (%p214) target = $region28
        $region27: #{tpu_custom_call.1} parent=15 // pred_region
          %s217 = sand.u32 %s18, 1
          %s218 = scalar_lea.sflag [#allocation10], %s217
          %s219 = sand.u32 %s105, 1
          %s220 = smul.addr %s219, 16
          %s221 = scalar_lea.vmem [#allocation11], %s220
          %s222 = smul.u32 8, %s27
          %s224 = ssub.s32 256, 256
          %225 = vsyncadd %s218, %s224
          %s226 = smul.addr %s222, 2
          %s227 = sadd.s32 %s25, %s226
          %s228 = smul.addr %s227, 32
          %s229 = scalar_lea.hbm %s2, %s228
          %s230 = sshll.u32 %s221, 4
          %s231 = int_to_ptr.vmem [resolvable:$true] %s230
          %236 = dma.hbm_to_vmem [thread:$0]  %s229, 256, %s231, %s218, 64, 32, 2
        $region28: #{tpu_custom_call.1} parent=15 // pred_fallthru
          _
      $region16: #{tpu_custom_call.1} parent=5 // pred_fallthru
        _
      %p237 = scmp.le.s32.totalorder 1, %s18
      %p238 = scmp.lt.s32.totalorder %s18, 3
      %p239 = pnand %p237, %p238
      %p240 = pneg %p239
      // Predicated region
      $region29: #{tpu_custom_call.1} parent=5 // pred_check
        _
      $region30: #{tpu_custom_call.1} parent=5 // pred_check_branch
        %242 = sbr.rel (%p239) target = $region32
      $region31: #{tpu_custom_call.1} parent=5 // pred_region
        %s243 = ssub.s32 %s18, 1
        %s244 = sand.u32 %s52, 1
        %s245 = scalar_lea.sflag [#allocation7], %s244
        %s246 = sand.u32 %s52, 1
        %s247 = smul.addr %s246, 16
        %s248 = scalar_lea.vmem [#allocation6], %s247
        // Predicated region
        $region33: #{tpu_custom_call.1} parent=31 // pred_check
          %p249 = pneg %p65
        $region34: #{tpu_custom_call.1} parent=31 // pred_check_branch
          %251 = sbr.rel (%p249) target = $region36
        $region35: #{tpu_custom_call.1} parent=31 // pred_region
          %252 = dma.done %s245, 256
        $region36: #{tpu_custom_call.1} parent=31 // pred_fallthru
          _
        %s253 = sand.u32 %s23, 1
        %s254 = scalar_lea.sflag [#allocation10], %s253
        %s255 = sand.u32 %s80, 1
        %s256 = smul.addr %s255, 16
        %s257 = scalar_lea.vmem [#allocation9], %s256
        // Predicated region
        $region37: #{tpu_custom_call.1} parent=31 // pred_check
          %p258 = pneg %p93
        $region38: #{tpu_custom_call.1} parent=31 // pred_check_branch
          %260 = sbr.rel (%p258) target = $region40
        $region39: #{tpu_custom_call.1} parent=31 // pred_region
          %261 = dma.done %s254, 256
        $region40: #{tpu_custom_call.1} parent=31 // pred_fallthru
          _
        %s262 = sand.u32 %s23, 1
        %s263 = scalar_lea.sflag [#allocation10], %s262
        %s264 = sand.u32 %s108, 1
        %s265 = smul.addr %s264, 16
        %s266 = scalar_lea.vmem [#allocation11], %s265
        // Predicated region
        $region41: #{tpu_custom_call.1} parent=31 // pred_check
          %p267 = pneg %p121
        $region42: #{tpu_custom_call.1} parent=31 // pred_check_branch
          %269 = sbr.rel (%p267) target = $region44
        $region43: #{tpu_custom_call.1} parent=31 // pred_region
          %270 = dma.done %s263, 256
        $region44: #{tpu_custom_call.1} parent=31 // pred_fallthru
          _
        %s271 = sand.u32 %s52, 1
        %s272 = scalar_lea.sflag [#allocation7], %s271
        %s273 = sand.u32 %s52, 1
        %s274 = smul.addr %s273, 16
        %s275 = scalar_lea.vmem [#allocation6], %s274
        %p276 = pneg %p65
        %p277 = pneg %p62
        %s278 = sand.u32 %s23, 1
        %s279 = scalar_lea.sflag [#allocation10], %s278
        %s280 = sand.u32 %s80, 1
        %s281 = smul.addr %s280, 16
        %s282 = scalar_lea.vmem [#allocation9], %s281
        %p283 = pneg %p93
        %p284 = pneg %p90
        %s285 = sand.u32 %s23, 1
        %s286 = scalar_lea.sflag [#allocation10], %s285
        %s287 = sand.u32 %s108, 1
        %s288 = smul.addr %s287, 16
        %s289 = scalar_lea.vmem [#allocation11], %s288
        %p290 = pneg %p121
        %p291 = pneg %p118
        %p292 = pneg %p149
        %p293 = pneg %p146
        %s294 = sand.u32 %s136, 1
        %s295 = scalar_lea.sflag [#allocation8], %s294
        %s296 = sand.u32 %s136, 1
        %s297 = smul.addr %s296, 16
        %s298 = scalar_lea.vmem [#allocation12], %s297
        %s299 = smul.u32 8, %s29
        %s300 = smul.u32 8, %s30
        %s301 = smul.u32 8, %s30
        %s302 = smul.u32 8, %s29
        %p303 = scmp.eq.s32.totalorder %s30, 0
        // Predicated region
        $region45: #{tpu_custom_call.1} parent=31 // pred_check
          %p304 = pneg %p303
        $region46: #{tpu_custom_call.1} parent=31 // pred_check_branch
          %306 = sbr.rel (%p304) target = $region48
        $region47: #{tpu_custom_call.1} parent=31 // pred_region
          %vm307 = vcmask 7168
          %308 = vst.msk [vmem:[#allocation3] sm:$0xff] %vm307, -inf
          %309 = vst.msk [vmem:[#allocation3 + $0x8] sm:$0xff] %vm307, -inf
          %310 = vst.msk [vmem:[#allocation4] sm:$0xff] %vm307, 0.0
          %311 = vst.msk [vmem:[#allocation4 + $0x8] sm:$0xff] %vm307, 0.0
          %vm312 = vcmask 261120
          %313 = vst.msk [vmem:[#allocation5] sm:$0xff] %vm312, 0.0
          %314 = vst.msk [vmem:[#allocation5 + $0x8] sm:$0xff] %vm312, 0.0
          %v315 = vld [vmem:[%s248] sm:$0x1]
          %v316 = vld [vmem:[%s248 + $0x2] sm:$0x1]
          %v317 = vld [vmem:[%s248 + $0x4] sm:$0x1]
          %v318 = vld [vmem:[%s248 + $0x6] sm:$0x1]
          %v319 = vld [vmem:[%s248 + $0x8] sm:$0x1]
          %v320 = vld [vmem:[%s248 + $0xa] sm:$0x1]
          %v321 = vld [vmem:[%s248 + $0xc] sm:$0x1]
          %v322 = vld [vmem:[%s248 + $0xe] sm:$0x1]
          %v323 = vmul.f32 %v315, 0.17677669
          %v324 = vmul.f32 %v316, 0.17677669
          %v325 = vmul.f32 %v317, 0.17677669
          %v326 = vmul.f32 %v318, 0.17677669
          %v327 = vmul.f32 %v319, 0.17677669
          %v328 = vmul.f32 %v320, 0.17677669
          %v329 = vmul.f32 %v321, 0.17677669
          %v330 = vmul.f32 %v322, 0.17677669
          %v339 = vrot.slane %v324, 7
          %vm340 = vcmask 1041409
          %v341 = vsel %vm340, %v339, %v323
          %v342 = vrot.slane %v325, 6
          %vm343 = vcmask 1042434
          %v344 = vsel %vm343, %v342, %v341
          %v345 = vrot.slane %v326, 5
          %vm346 = vcmask 1043459
          %v347 = vsel %vm346, %v345, %v344
          %v348 = vrot.slane %v327, 4
          %vm349 = vcmask 1044484
          %v350 = vsel %vm349, %v348, %v347
          %v351 = vrot.slane %v328, 3
          %vm352 = vcmask 1045509
          %v353 = vsel %vm352, %v351, %v350
          %v354 = vrot.slane %v329, 2
          %vm355 = vcmask 1046534
          %v356 = vsel %vm355, %v354, %v353
          %v357 = vrot.slane %v330, 1
          %vm358 = vcmask 1047559
          %v359 = vsel %vm358, %v357, %v356
          %361 = vst.msk [vmem:[#allocation2] sm:$0xff] %vm312, %v359
          %v362 = vld [vmem:[%s248 + $0x1] sm:$0x1]
          %v363 = vld [vmem:[%s248 + $0x3] sm:$0x1]
          %v364 = vld [vmem:[%s248 + $0x5] sm:$0x1]
          %v365 = vld [vmem:[%s248 + $0x7] sm:$0x1]
          %v366 = vld [vmem:[%s248 + $0x9] sm:$0x1]
          %v367 = vld [vmem:[%s248 + $0xb] sm:$0x1]
          %v368 = vld [vmem:[%s248 + $0xd] sm:$0x1]
          %v369 = vld [vmem:[%s248 + $0xf] sm:$0x1]
          %v370 = vmul.f32 %v362, 0.17677669
          %v371 = vmul.f32 %v363, 0.17677669
          %v372 = vmul.f32 %v364, 0.17677669
          %v373 = vmul.f32 %v365, 0.17677669
          %v374 = vmul.f32 %v366, 0.17677669
          %v375 = vmul.f32 %v367, 0.17677669
          %v376 = vmul.f32 %v368, 0.17677669
          %v377 = vmul.f32 %v369, 0.17677669
          %v386 = vrot.slane %v371, 7
          %v387 = vsel %vm340, %v386, %v370
          %v388 = vrot.slane %v372, 6
          %v389 = vsel %vm343, %v388, %v387
          %v390 = vrot.slane %v373, 5
          %v391 = vsel %vm346, %v390, %v389
          %v392 = vrot.slane %v374, 4
          %v393 = vsel %vm349, %v392, %v391
          %v394 = vrot.slane %v375, 3
          %v395 = vsel %vm352, %v394, %v393
          %v396 = vrot.slane %v376, 2
          %v397 = vsel %vm355, %v396, %v395
          %v398 = vrot.slane %v377, 1
          %v399 = vsel %vm358, %v398, %v397
          %s401 = scalar_lea.vmem [#allocation2], 8
          %402 = vst.msk [vmem:[%s401] sm:$0xff] %vm312, %v399
        $region48: #{tpu_custom_call.1} parent=31 // pred_fallthru
          _
        %v403 = vld [vmem:[#allocation2] sm:$0xff]
        %v404 = vld [vmem:[%s257] sm:$0x1]
        %v405 = vld [vmem:[%s257 + $0x2] sm:$0x1]
        %v406 = vld [vmem:[%s257 + $0x4] sm:$0x1]
        %v407 = vld [vmem:[%s257 + $0x6] sm:$0x1]
        %v408 = vld [vmem:[%s257 + $0x8] sm:$0x1]
        %v409 = vld [vmem:[%s257 + $0xa] sm:$0x1]
        %v410 = vld [vmem:[%s257 + $0xc] sm:$0x1]
        %v411 = vld [vmem:[%s257 + $0xe] sm:$0x1]
        %v420 = vrot.slane %v405, 7
        %vm421 = vcmask 1041409
        %v422 = vsel %vm421, %v420, %v404
        %v423 = vrot.slane %v406, 6
        %vm424 = vcmask 1042434
        %v425 = vsel %vm424, %v423, %v422
        %v426 = vrot.slane %v407, 5
        %vm427 = vcmask 1043459
        %v428 = vsel %vm427, %v426, %v425
        %v429 = vrot.slane %v408, 4
        %vm430 = vcmask 1044484
        %v431 = vsel %vm430, %v429, %v428
        %v432 = vrot.slane %v409, 3
        %vm433 = vcmask 1045509
        %v434 = vsel %vm433, %v432, %v431
        %v435 = vrot.slane %v410, 2
        %vm436 = vcmask 1046534
        %v437 = vsel %vm436, %v435, %v434
        %v438 = vrot.slane %v411, 1
        %vm439 = vcmask 1047559
        %v440 = vsel %vm439, %v438, %v437
        %vm441 = vcmask 261120
        %v443 = vsel %vm441, %v403, 0
        %v445 = vsel %vm441, %v440, 0
        %447 = vmatprep.subr.mxu0 0.0
        %448 = vmatpush1.xpose.msra.mxu0 0.0
        %449 = vmatprep.subr.mxu0 0.0
        %450 = vmatpush1.xpose.msra.mxu0 0.0
        %451 = vmatprep.subr.mxu0 0.0
        %452 = vmatpush1.xpose.msra.mxu0 0.0
        %453 = vmatprep.subr.mxu0 0.0
        %454 = vmatpush1.xpose.msra.mxu0 0.0
        %455 = vmatprep.subr.mxu0 0.0
        %456 = vmatpush1.xpose.msra.mxu0 0.0
        %457 = vmatprep.subr.mxu0 0.0
        %458 = vmatpush1.xpose.msra.mxu0 0.0
        %459 = vmatprep.subr.mxu0 0.0
        %460 = vmatpush1.xpose.msra.mxu0 0.0
        %461 = vmatprep.subr.mxu0 0.0
        %462 = vmatpush1.xpose.msra.mxu0 0.0
        %463 = vmatprep.subr.mxu0 0.0
        %464 = vmatpush1.xpose.msra.mxu0 0.0
        %465 = vmatprep.subr.mxu0 0.0
        %466 = vmatpush1.xpose.msra.mxu0 0.0
        %467 = vmatprep.subr.mxu0 0.0
        %468 = vmatpush1.xpose.msra.mxu0 0.0
        %469 = vmatprep.subr.mxu0 0.0
        %470 = vmatpush1.xpose.msra.mxu0 0.0
        %471 = vmatprep.subr.mxu0 0.0
        %472 = vmatpush1.xpose.msra.mxu0 0.0
        %473 = vmatprep.subr.mxu0 0.0
        %474 = vmatpush1.xpose.msra.mxu0 0.0
        %475 = vmatprep.subr.mxu0 0.0
        %476 = vmatpush1.xpose.msra.mxu0 0.0
        %477 = vmatprep.subr.mxu0 0.0
        %478 = vmatpush1.xpose.msra.mxu0 %v445
        %479 = vmatprep.subr.mxu0 0.0
        %480 = vmatpush2.xpose.msra.mxu0 0.0
        %481 = vmatprep.subr.mxu0 0.0
        %482 = vmatpush2.xpose.msra.mxu0 0.0
        %483 = vmatprep.subr.mxu0 0.0
        %484 = vmatpush2.xpose.msra.mxu0 0.0
        %485 = vmatprep.subr.mxu0 0.0
        %486 = vmatpush2.xpose.msra.mxu0 0.0
        %487 = vmatprep.subr.mxu0 0.0
        %488 = vmatpush2.xpose.msra.mxu0 0.0
        %489 = vmatprep.subr.mxu0 0.0
        %490 = vmatpush2.xpose.msra.mxu0 0.0
        %491 = vmatprep.subr.mxu0 0.0
        %492 = vmatpush2.xpose.msra.mxu0 0.0
        %493 = vmatprep.subr.mxu0 0.0
        %494 = vmatpush2.xpose.msra.mxu0 0.0
        %495 = vmatprep.subr.mxu0 0.0
        %496 = vmatpush2.xpose.msra.mxu0 0.0
        %497 = vmatprep.subr.mxu0 0.0
        %498 = vmatpush2.xpose.msra.mxu0 0.0
        %499 = vmatprep.subr.mxu0 0.0
        %500 = vmatpush2.xpose.msra.mxu0 0.0
        %501 = vmatprep.subr.mxu0 0.0
        %502 = vmatpush2.xpose.msra.mxu0 0.0
        %503 = vmatprep.subr.mxu0 0.0
        %504 = vmatpush2.xpose.msra.mxu0 0.0
        %505 = vmatprep.subr.mxu0 0.0
        %506 = vmatpush2.xpose.msra.mxu0 0.0
        %507 = vmatprep.subr.mxu0 0.0
        %508 = vmatpush2.xpose.msra.mxu0 0.0
        %509 = vmatprep.subr.mxu0 0.0
        %510 = vmatpush2.xpose.msra.mxu0 0.0
        %511 = vmatprep.mubr.f32.mxu0 0.0
        %512 = vmatmul.mubr.f32.gmra.mxu0 %v443
        %v513 = vpop.f32.mrf.mxu0
        %v514 = vadd.f32 0.0, %v513
        %v515 = vpop.f32.mrf.mxu0
        %516 = vdwg.mxu0
        %v517 = vld [vmem:[#allocation3] sm:$0xff]
        %vm518 = vcmask 64512
        %v519 = vsel %vm518, %v514, -inf
        %520 = vmax.xlane.f32.xlu0 %v519
        %v521 = vpop.xlane.xlu0 %520
        %v522 = vmax.f32 %v517, %v521
        %v523 = vsub.f32 %v517, %v522
        %v524 = vmul.f32 %v523, 1.442695
        %v525 = vpow.pop %v524
        %527 = vset.pattern.permute.xlu0 0
        %528 = vperm.xlu0 %527, %v522
        %v529 = vpop.permute.xlu0 %528
        %v531 = vsub.f32 %v514, %v529
        %v532 = vmul.f32 %v531, 1.442695
        %v533 = vpow.pop %v532
        %v534 = vld [vmem:[#allocation4] sm:$0xff]
        %v535 = vmul.f32 %v525, %v534
        %v536 = vsel %vm518, %v533, 0.0
        %537 = vadd.xlane.f32.xlu0 %v536
        %v538 = vpop.xlane.xlu0 %537
        %v539 = vadd.f32 %v535, %v538
        %vm540 = vcmask 7168
        %541 = vst.msk [vmem:[#allocation4] sm:$0xff] %vm540, %v539
        %v542 = vld [vmem:[#allocation5] sm:$0xff]
        %544 = vset.pattern.permute.xlu0 0
        %545 = vperm.xlu0 %544, %v525
        %v546 = vpop.permute.xlu0 %545
        %v548 = vmul.f32 %v546, %v542
        %v549 = vld [vmem:[%s266] sm:$0x1]
        %v550 = vld [vmem:[%s266 + $0x2] sm:$0x1]
        %v551 = vld [vmem:[%s266 + $0x4] sm:$0x1]
        %v552 = vld [vmem:[%s266 + $0x6] sm:$0x1]
        %v553 = vld [vmem:[%s266 + $0x8] sm:$0x1]
        %v554 = vld [vmem:[%s266 + $0xa] sm:$0x1]
        %v555 = vld [vmem:[%s266 + $0xc] sm:$0x1]
        %v556 = vld [vmem:[%s266 + $0xe] sm:$0x1]
        %v565 = vrot.slane %v550, 7
        %v566 = vsel %vm421, %v565, %v549
        %v567 = vrot.slane %v551, 6
        %v568 = vsel %vm424, %v567, %v566
        %v569 = vrot.slane %v552, 5
        %v570 = vsel %vm427, %v569, %v568
        %v571 = vrot.slane %v553, 4
        %v572 = vsel %vm430, %v571, %v570
        %v573 = vrot.slane %v554, 3
        %v574 = vsel %vm433, %v573, %v572
        %v575 = vrot.slane %v555, 2
        %v576 = vsel %vm436, %v575, %v574
        %v577 = vrot.slane %v556, 1
        %v578 = vsel %vm439, %v577, %v576
        %v581 = vsel %vm518, %v533, 0
        %583 = vmatprep.subr.mxu0 0.0
        %584 = vmatpush1.msra.mxu0 0.0
        %585 = vmatprep.subr.mxu0 0.0
        %586 = vmatpush1.msra.mxu0 0.0
        %587 = vmatprep.subr.mxu0 0.0
        %588 = vmatpush1.msra.mxu0 0.0
        %589 = vmatprep.subr.mxu0 0.0
        %590 = vmatpush1.msra.mxu0 0.0
        %591 = vmatprep.subr.mxu0 0.0
        %592 = vmatpush1.msra.mxu0 0.0
        %593 = vmatprep.subr.mxu0 0.0
        %594 = vmatpush1.msra.mxu0 0.0
        %595 = vmatprep.subr.mxu0 0.0
        %596 = vmatpush1.msra.mxu0 0.0
        %597 = vmatprep.subr.mxu0 0.0
        %598 = vmatpush1.msra.mxu0 0.0
        %599 = vmatprep.subr.mxu0 0.0
        %600 = vmatpush1.msra.mxu0 0.0
        %601 = vmatprep.subr.mxu0 0.0
        %602 = vmatpush1.msra.mxu0 0.0
        %603 = vmatprep.subr.mxu0 0.0
        %604 = vmatpush1.msra.mxu0 0.0
        %605 = vmatprep.subr.mxu0 0.0
        %606 = vmatpush1.msra.mxu0 0.0
        %607 = vmatprep.subr.mxu0 0.0
        %608 = vmatpush1.msra.mxu0 0.0
        %609 = vmatprep.subr.mxu0 0.0
        %610 = vmatpush1.msra.mxu0 0.0
        %611 = vmatprep.subr.mxu0 0.0
        %612 = vmatpush1.msra.mxu0 0.0
        %613 = vmatprep.subr.mxu0 0.0
        %614 = vmatpush1.msra.mxu0 %v578
        %615 = vmatprep.subr.mxu0 0.0
        %616 = vmatpush2.msra.mxu0 0.0
        %617 = vmatprep.subr.mxu0 0.0
        %618 = vmatpush2.msra.mxu0 0.0
        %619 = vmatprep.subr.mxu0 0.0
        %620 = vmatpush2.msra.mxu0 0.0
        %621 = vmatprep.subr.mxu0 0.0
        %622 = vmatpush2.msra.mxu0 0.0
        %623 = vmatprep.subr.mxu0 0.0
        %624 = vmatpush2.msra.mxu0 0.0
        %625 = vmatprep.subr.mxu0 0.0
        %626 = vmatpush2.msra.mxu0 0.0
        %627 = vmatprep.subr.mxu0 0.0
        %628 = vmatpush2.msra.mxu0 0.0
        %629 = vmatprep.subr.mxu0 0.0
        %630 = vmatpush2.msra.mxu0 0.0
        %631 = vmatprep.subr.mxu0 0.0
        %632 = vmatpush2.msra.mxu0 0.0
        %633 = vmatprep.subr.mxu0 0.0
        %634 = vmatpush2.msra.mxu0 0.0
        %635 = vmatprep.subr.mxu0 0.0
        %636 = vmatpush2.msra.mxu0 0.0
        %637 = vmatprep.subr.mxu0 0.0
        %638 = vmatpush2.msra.mxu0 0.0
        %639 = vmatprep.subr.mxu0 0.0
        %640 = vmatpush2.msra.mxu0 0.0
        %641 = vmatprep.subr.mxu0 0.0
        %642 = vmatpush2.msra.mxu0 0.0
        %643 = vmatprep.subr.mxu0 0.0
        %644 = vmatpush2.msra.mxu0 0.0
        %645 = vmatprep.subr.mxu0 0.0
        %646 = vmatpush2.msra.mxu0 0.0
        %647 = vmatprep.mubr.f32.mxu0 0.0
        %648 = vmatmul.mubr.f32.gmra.mxu0 %v581
        %v649 = vpop.f32.mrf.mxu0
        %v650 = vadd.f32 0.0, %v649
        %v651 = vpop.f32.mrf.mxu0
        %652 = vdwg.mxu0
        %v653 = vadd.f32 %v548, %v650
        %654 = vst.msk [vmem:[#allocation5] sm:$0xff] %vm441, %v653
        %655 = vst.msk [vmem:[#allocation3] sm:$0xff] %vm540, %v522
        %s656 = scalar_lea.vmem [#allocation2], 8
        %v657 = vld [vmem:[%s656] sm:$0xff]
        %v658 = vld [vmem:[%s257 + $0x1] sm:$0x1]
        %v659 = vld [vmem:[%s257 + $0x3] sm:$0x1]
        %v660 = vld [vmem:[%s257 + $0x5] sm:$0x1]
        %v661 = vld [vmem:[%s257 + $0x7] sm:$0x1]
        %v662 = vld [vmem:[%s257 + $0x9] sm:$0x1]
        %v663 = vld [vmem:[%s257 + $0xb] sm:$0x1]
        %v664 = vld [vmem:[%s257 + $0xd] sm:$0x1]
        %v665 = vld [vmem:[%s257 + $0xf] sm:$0x1]
        %v674 = vrot.slane %v659, 7
        %v675 = vsel %vm421, %v674, %v658
        %v676 = vrot.slane %v660, 6
        %v677 = vsel %vm424, %v676, %v675
        %v678 = vrot.slane %v661, 5
        %v679 = vsel %vm427, %v678, %v677
        %v680 = vrot.slane %v662, 4
        %v681 = vsel %vm430, %v680, %v679
        %v682 = vrot.slane %v663, 3
        %v683 = vsel %vm433, %v682, %v681
        %v684 = vrot.slane %v664, 2
        %v685 = vsel %vm436, %v684, %v683
        %v686 = vrot.slane %v665, 1
        %v687 = vsel %vm439, %v686, %v685
        %v689 = vsel %vm441, %v657, 0
        %v691 = vsel %vm441, %v687, 0
        %693 = vmatprep.subr.mxu0 0.0
        %694 = vmatpush1.xpose.msra.mxu0 0.0
        %695 = vmatprep.subr.mxu0 0.0
        %696 = vmatpush1.xpose.msra.mxu0 0.0
        %697 = vmatprep.subr.mxu0 0.0
        %698 = vmatpush1.xpose.msra.mxu0 0.0
        %699 = vmatprep.subr.mxu0 0.0
        %700 = vmatpush1.xpose.msra.mxu0 0.0
        %701 = vmatprep.subr.mxu0 0.0
        %702 = vmatpush1.xpose.msra.mxu0 0.0
        %703 = vmatprep.subr.mxu0 0.0
        %704 = vmatpush1.xpose.msra.mxu0 0.0
        %705 = vmatprep.subr.mxu0 0.0
        %706 = vmatpush1.xpose.msra.mxu0 0.0
        %707 = vmatprep.subr.mxu0 0.0
        %708 = vmatpush1.xpose.msra.mxu0 0.0
        %709 = vmatprep.subr.mxu0 0.0
        %710 = vmatpush1.xpose.msra.mxu0 0.0
        %711 = vmatprep.subr.mxu0 0.0
        %712 = vmatpush1.xpose.msra.mxu0 0.0
        %713 = vmatprep.subr.mxu0 0.0
        %714 = vmatpush1.xpose.msra.mxu0 0.0
        %715 = vmatprep.subr.mxu0 0.0
        %716 = vmatpush1.xpose.msra.mxu0 0.0
        %717 = vmatprep.subr.mxu0 0.0
        %718 = vmatpush1.xpose.msra.mxu0 0.0
        %719 = vmatprep.subr.mxu0 0.0
        %720 = vmatpush1.xpose.msra.mxu0 0.0
        %721 = vmatprep.subr.mxu0 0.0
        %722 = vmatpush1.xpose.msra.mxu0 0.0
        %723 = vmatprep.subr.mxu0 0.0
        %724 = vmatpush1.xpose.msra.mxu0 %v691
        %725 = vmatprep.subr.mxu0 0.0
        %726 = vmatpush2.xpose.msra.mxu0 0.0
        %727 = vmatprep.subr.mxu0 0.0
        %728 = vmatpush2.xpose.msra.mxu0 0.0
        %729 = vmatprep.subr.mxu0 0.0
        %730 = vmatpush2.xpose.msra.mxu0 0.0
        %731 = vmatprep.subr.mxu0 0.0
        %732 = vmatpush2.xpose.msra.mxu0 0.0
        %733 = vmatprep.subr.mxu0 0.0
        %734 = vmatpush2.xpose.msra.mxu0 0.0
        %735 = vmatprep.subr.mxu0 0.0
        %736 = vmatpush2.xpose.msra.mxu0 0.0
        %737 = vmatprep.subr.mxu0 0.0
        %738 = vmatpush2.xpose.msra.mxu0 0.0
        %739 = vmatprep.subr.mxu0 0.0
        %740 = vmatpush2.xpose.msra.mxu0 0.0
        %741 = vmatprep.subr.mxu0 0.0
        %742 = vmatpush2.xpose.msra.mxu0 0.0
        %743 = vmatprep.subr.mxu0 0.0
        %744 = vmatpush2.xpose.msra.mxu0 0.0
        %745 = vmatprep.subr.mxu0 0.0
        %746 = vmatpush2.xpose.msra.mxu0 0.0
        %747 = vmatprep.subr.mxu0 0.0
        %748 = vmatpush2.xpose.msra.mxu0 0.0
        %749 = vmatprep.subr.mxu0 0.0
        %750 = vmatpush2.xpose.msra.mxu0 0.0
        %751 = vmatprep.subr.mxu0 0.0
        %752 = vmatpush2.xpose.msra.mxu0 0.0
        %753 = vmatprep.subr.mxu0 0.0
        %754 = vmatpush2.xpose.msra.mxu0 0.0
        %755 = vmatprep.subr.mxu0 0.0
        %756 = vmatpush2.xpose.msra.mxu0 0.0
        %757 = vmatprep.mubr.f32.mxu0 0.0
        %758 = vmatmul.mubr.f32.gmra.mxu0 %v689
        %v759 = vpop.f32.mrf.mxu0
        %v760 = vadd.f32 0.0, %v759
        %v761 = vpop.f32.mrf.mxu0
        %762 = vdwg.mxu0
        %s763 = scalar_lea.vmem [#allocation3], 8
        %v764 = vld [vmem:[%s763] sm:$0xff]
        %v765 = vsel %vm518, %v760, -inf
        %766 = vmax.xlane.f32.xlu0 %v765
        %v767 = vpop.xlane.xlu0 %766
        %v768 = vmax.f32 %v764, %v767
        %v769 = vsub.f32 %v764, %v768
        %v770 = vmul.f32 %v769, 1.442695
        %v771 = vpow.pop %v770
        %773 = vset.pattern.permute.xlu0 0
        %774 = vperm.xlu0 %773, %v768
        %v775 = vpop.permute.xlu0 %774
        %v777 = vsub.f32 %v760, %v775
        %v778 = vmul.f32 %v777, 1.442695
        %v779 = vpow.pop %v778
        %s780 = scalar_lea.vmem [#allocation4], 8
        %v781 = vld [vmem:[%s780] sm:$0xff]
        %v782 = vmul.f32 %v771, %v781
        %v783 = vsel %vm518, %v779, 0.0
        %784 = vadd.xlane.f32.xlu0 %v783
        %v785 = vpop.xlane.xlu0 %784
        %v786 = vadd.f32 %v782, %v785
        %787 = vst.msk [vmem:[%s780] sm:$0xff] %vm540, %v786
        %s788 = scalar_lea.vmem [#allocation5], 8
        %v789 = vld [vmem:[%s788] sm:$0xff]
        %791 = vset.pattern.permute.xlu0 0
        %792 = vperm.xlu0 %791, %v771
        %v793 = vpop.permute.xlu0 %792
        %v795 = vmul.f32 %v793, %v789
        %v796 = vld [vmem:[%s266 + $0x1] sm:$0x1]
        %v797 = vld [vmem:[%s266 + $0x3] sm:$0x1]
        %v798 = vld [vmem:[%s266 + $0x5] sm:$0x1]
        %v799 = vld [vmem:[%s266 + $0x7] sm:$0x1]
        %v800 = vld [vmem:[%s266 + $0x9] sm:$0x1]
        %v801 = vld [vmem:[%s266 + $0xb] sm:$0x1]
        %v802 = vld [vmem:[%s266 + $0xd] sm:$0x1]
        %v803 = vld [vmem:[%s266 + $0xf] sm:$0x1]
        %v812 = vrot.slane %v797, 7
        %v813 = vsel %vm421, %v812, %v796
        %v814 = vrot.slane %v798, 6
        %v815 = vsel %vm424, %v814, %v813
        %v816 = vrot.slane %v799, 5
        %v817 = vsel %vm427, %v816, %v815
        %v818 = vrot.slane %v800, 4
        %v819 = vsel %vm430, %v818, %v817
        %v820 = vrot.slane %v801, 3
        %v821 = vsel %vm433, %v820, %v819
        %v822 = vrot.slane %v802, 2
        %v823 = vsel %vm436, %v822, %v821
        %v824 = vrot.slane %v803, 1
        %v825 = vsel %vm439, %v824, %v823
        %v828 = vsel %vm518, %v779, 0
        %830 = vmatprep.subr.mxu0 0.0
        %831 = vmatpush1.msra.mxu0 0.0
        %832 = vmatprep.subr.mxu0 0.0
        %833 = vmatpush1.msra.mxu0 0.0
        %834 = vmatprep.subr.mxu0 0.0
        %835 = vmatpush1.msra.mxu0 0.0
        %836 = vmatprep.subr.mxu0 0.0
        %837 = vmatpush1.msra.mxu0 0.0
        %838 = vmatprep.subr.mxu0 0.0
        %839 = vmatpush1.msra.mxu0 0.0
        %840 = vmatprep.subr.mxu0 0.0
        %841 = vmatpush1.msra.mxu0 0.0
        %842 = vmatprep.subr.mxu0 0.0
        %843 = vmatpush1.msra.mxu0 0.0
        %844 = vmatprep.subr.mxu0 0.0
        %845 = vmatpush1.msra.mxu0 0.0
        %846 = vmatprep.subr.mxu0 0.0
        %847 = vmatpush1.msra.mxu0 0.0
        %848 = vmatprep.subr.mxu0 0.0
        %849 = vmatpush1.msra.mxu0 0.0
        %850 = vmatprep.subr.mxu0 0.0
        %851 = vmatpush1.msra.mxu0 0.0
        %852 = vmatprep.subr.mxu0 0.0
        %853 = vmatpush1.msra.mxu0 0.0
        %854 = vmatprep.subr.mxu0 0.0
        %855 = vmatpush1.msra.mxu0 0.0
        %856 = vmatprep.subr.mxu0 0.0
        %857 = vmatpush1.msra.mxu0 0.0
        %858 = vmatprep.subr.mxu0 0.0
        %859 = vmatpush1.msra.mxu0 0.0
        %860 = vmatprep.subr.mxu0 0.0
        %861 = vmatpush1.msra.mxu0 %v825
        %862 = vmatprep.subr.mxu0 0.0
        %863 = vmatpush2.msra.mxu0 0.0
        %864 = vmatprep.subr.mxu0 0.0
        %865 = vmatpush2.msra.mxu0 0.0
        %866 = vmatprep.subr.mxu0 0.0
        %867 = vmatpush2.msra.mxu0 0.0
        %868 = vmatprep.subr.mxu0 0.0
        %869 = vmatpush2.msra.mxu0 0.0
        %870 = vmatprep.subr.mxu0 0.0
        %871 = vmatpush2.msra.mxu0 0.0
        %872 = vmatprep.subr.mxu0 0.0
        %873 = vmatpush2.msra.mxu0 0.0
        %874 = vmatprep.subr.mxu0 0.0
        %875 = vmatpush2.msra.mxu0 0.0
        %876 = vmatprep.subr.mxu0 0.0
        %877 = vmatpush2.msra.mxu0 0.0
        %878 = vmatprep.subr.mxu0 0.0
        %879 = vmatpush2.msra.mxu0 0.0
        %880 = vmatprep.subr.mxu0 0.0
        %881 = vmatpush2.msra.mxu0 0.0
        %882 = vmatprep.subr.mxu0 0.0
        %883 = vmatpush2.msra.mxu0 0.0
        %884 = vmatprep.subr.mxu0 0.0
        %885 = vmatpush2.msra.mxu0 0.0
        %886 = vmatprep.subr.mxu0 0.0
        %887 = vmatpush2.msra.mxu0 0.0
        %888 = vmatprep.subr.mxu0 0.0
        %889 = vmatpush2.msra.mxu0 0.0
        %890 = vmatprep.subr.mxu0 0.0
        %891 = vmatpush2.msra.mxu0 0.0
        %892 = vmatprep.subr.mxu0 0.0
        %893 = vmatpush2.msra.mxu0 0.0
        %894 = vmatprep.mubr.f32.mxu0 0.0
        %895 = vmatmul.mubr.f32.gmra.mxu0 %v828
        %v896 = vpop.f32.mrf.mxu0
        %v897 = vadd.f32 0.0, %v896
        %v898 = vpop.f32.mrf.mxu0
        %899 = vdwg.mxu0
        %v900 = vadd.f32 %v795, %v897
        %901 = vst.msk [vmem:[%s788] sm:$0xff] %vm441, %v900
        %902 = vst.msk [vmem:[%s763] sm:$0xff] %vm540, %v768
        // Predicated region
        $region49: #{tpu_custom_call.1} parent=31 // pred_check
          %p903 = pneg %p303
        $region50: #{tpu_custom_call.1} parent=31 // pred_check_branch
          %905 = sbr.rel (%p903) target = $region52
        $region51: #{tpu_custom_call.1} parent=31 // pred_region
          %v906 = vld [vmem:[#allocation5] sm:$0xff]
          %v907 = vld [vmem:[#allocation4] sm:$0xff]
          %909 = vset.pattern.permute.xlu0 0
          %910 = vperm.xlu0 %909, %v907
          %v911 = vpop.permute.xlu0 %910
          %v913 = vrcp.pop %v911
          %v914 = vmul.f32 %v906, %v913
          %v916 = vcombine.high %v914, %v914
          %v918 = vunpack.c.l.s4 1966171168
          %v919 = vunpack.c.0.s8 %v918
          %v920 = vlaneseq
          %v921 = vshrl.u32 %v920, 7
          %v922 = vsub.s32 %v919, %v921
          %v923 = vrot.slane %v914, %v922
          %v925 = vunpack.c.l.s4 1966171168
          %v926 = vunpack.c.0.s8 %v925
          %v927 = vlaneseq
          %v928 = vshrl.u32 %v927, 7
          %v929 = vsub.s32 %v926, %v928
          %v930 = vrot.slane %v916, %v929
          %v931 = vcombine.high %v923, %v923
          %v932 = vcombine.high %v930, %v930
          %v934 = vunpack.c.l.s4 1966171168
          %v935 = vunpack.c.0.s8 %v934
          %v936 = vlaneseq
          %v937 = vshrl.u32 %v936, 7
          %v938 = vsub.s32 %v935, %v937
          %v939 = vrot.slane %v923, %v938
          %v941 = vunpack.c.l.s4 1966171168
          %v942 = vunpack.c.0.s8 %v941
          %v943 = vlaneseq
          %v944 = vshrl.u32 %v943, 7
          %v945 = vsub.s32 %v942, %v944
          %v946 = vrot.slane %v930, %v945
          %v948 = vunpack.c.l.s4 1966171168
          %v949 = vunpack.c.0.s8 %v948
          %v950 = vlaneseq
          %v951 = vshrl.u32 %v950, 7
          %v952 = vsub.s32 %v949, %v951
          %v953 = vrot.slane %v931, %v952
          %v955 = vunpack.c.l.s4 1966171168
          %v956 = vunpack.c.0.s8 %v955
          %v957 = vlaneseq
          %v958 = vshrl.u32 %v957, 7
          %v959 = vsub.s32 %v956, %v958
          %v960 = vrot.slane %v932, %v959
          %v961 = vcombine.high %v939, %v939
          %v962 = vcombine.high %v946, %v946
          %v963 = vcombine.high %v953, %v953
          %v964 = vcombine.high %v960, %v960
          %vm973 = vcmask 253952
          %974 = vst.msk [vmem:[%s298] sm:$0x1] %vm973, %v939
          %975 = vst.msk [vmem:[%s298 + $0x2] sm:$0x1] %vm973, %v953
          %976 = vst.msk [vmem:[%s298 + $0x4] sm:$0x1] %vm973, %v961
          %977 = vst.msk [vmem:[%s298 + $0x6] sm:$0x1] %vm973, %v963
          %978 = vst.msk [vmem:[%s298 + $0x8] sm:$0x1] %vm973, %v946
          %979 = vst.msk [vmem:[%s298 + $0xa] sm:$0x1] %vm973, %v960
          %980 = vst.msk [vmem:[%s298 + $0xc] sm:$0x1] %vm973, %v962
          %981 = vst.msk [vmem:[%s298 + $0xe] sm:$0x1] %vm973, %v964
          %v982 = vld [vmem:[%s788] sm:$0xff]
          %v983 = vld [vmem:[%s780] sm:$0xff]
          %985 = vset.pattern.permute.xlu0 0
          %986 = vperm.xlu0 %985, %v983
          %v987 = vpop.permute.xlu0 %986
          %v989 = vrcp.pop %v987
          %v990 = vmul.f32 %v982, %v989
          %v992 = vcombine.high %v990, %v990
          %v994 = vunpack.c.l.s4 1966171168
          %v995 = vunpack.c.0.s8 %v994
          %v996 = vlaneseq
          %v997 = vshrl.u32 %v996, 7
          %v998 = vsub.s32 %v995, %v997
          %v999 = vrot.slane %v990, %v998
          %v1001 = vunpack.c.l.s4 1966171168
          %v1002 = vunpack.c.0.s8 %v1001
          %v1003 = vlaneseq
          %v1004 = vshrl.u32 %v1003, 7
          %v1005 = vsub.s32 %v1002, %v1004
          %v1006 = vrot.slane %v992, %v1005
          %v1007 = vcombine.high %v999, %v999
          %v1008 = vcombine.high %v1006, %v1006
          %v1010 = vunpack.c.l.s4 1966171168
          %v1011 = vunpack.c.0.s8 %v1010
          %v1012 = vlaneseq
          %v1013 = vshrl.u32 %v1012, 7
          %v1014 = vsub.s32 %v1011, %v1013
          %v1015 = vrot.slane %v999, %v1014
          %v1017 = vunpack.c.l.s4 1966171168
          %v1018 = vunpack.c.0.s8 %v1017
          %v1019 = vlaneseq
          %v1020 = vshrl.u32 %v1019, 7
          %v1021 = vsub.s32 %v1018, %v1020
          %v1022 = vrot.slane %v1006, %v1021
          %v1024 = vunpack.c.l.s4 1966171168
          %v1025 = vunpack.c.0.s8 %v1024
          %v1026 = vlaneseq
          %v1027 = vshrl.u32 %v1026, 7
          %v1028 = vsub.s32 %v1025, %v1027
          %v1029 = vrot.slane %v1007, %v1028
          %v1031 = vunpack.c.l.s4 1966171168
          %v1032 = vunpack.c.0.s8 %v1031
          %v1033 = vlaneseq
          %v1034 = vshrl.u32 %v1033, 7
          %v1035 = vsub.s32 %v1032, %v1034
          %v1036 = vrot.slane %v1008, %v1035
          %v1037 = vcombine.high %v1015, %v1015
          %v1038 = vcombine.high %v1022, %v1022
          %v1039 = vcombine.high %v1029, %v1029
          %v1040 = vcombine.high %v1036, %v1036
          %1049 = vst.msk [vmem:[%s298 + $0x1] sm:$0x1] %vm973, %v1015
          %1050 = vst.msk [vmem:[%s298 + $0x3] sm:$0x1] %vm973, %v1029
          %1051 = vst.msk [vmem:[%s298 + $0x5] sm:$0x1] %vm973, %v1037
          %1052 = vst.msk [vmem:[%s298 + $0x7] sm:$0x1] %vm973, %v1039
          %1053 = vst.msk [vmem:[%s298 + $0x9] sm:$0x1] %vm973, %v1022
          %1054 = vst.msk [vmem:[%s298 + $0xb] sm:$0x1] %vm973, %v1036
          %1055 = vst.msk [vmem:[%s298 + $0xd] sm:$0x1] %vm973, %v1038
          %1056 = vst.msk [vmem:[%s298 + $0xf] sm:$0x1] %vm973, %v1040
        $region52: #{tpu_custom_call.1} parent=31 // pred_fallthru
          _
        %s1057 = sand.u32 %s136, 1
        %s1058 = scalar_lea.sflag [#allocation8], %s1057
        %s1059 = sand.u32 %s136, 1
        %s1060 = smul.addr %s1059, 16
        %s1061 = scalar_lea.vmem [#allocation12], %s1060
        // Predicated region
        $region53: #{tpu_custom_call.1} parent=31 // pred_check
          %p1062 = pneg %p146
        $region54: #{tpu_custom_call.1} parent=31 // pred_check_branch
          %1064 = sbr.rel (%p1062) target = $region56
        $region55: #{tpu_custom_call.1} parent=31 // pred_region
          %s1065 = smul.u32 8, %s29
          %s1067 = ssub.s32 256, 256
          %1068 = vsyncadd %s1058, %s1067
          %s1069 = smul.addr %s1065, 2
          %s1070 = sadd.s32 %s28, %s1069
          %s1071 = smul.addr %s1070, 32
          %s1072 = scalar_lea.hbm %s3, %s1071
          %s1073 = sshll.u32 %s1061, 4
          %s1074 = int_to_ptr.vmem [resolvable:$true] %s1073
          %1079 = dma.vmem_to_hbm [thread:$0]  %s1074, 256, %s1072, %s1058, 32, 64, 2
        $region56: #{tpu_custom_call.1} parent=31 // pred_fallthru
          _
      $region32: #{tpu_custom_call.1} parent=5 // pred_fallthru
        _
      %p1080 = scmp.le.s32.totalorder 2, %s18
      // Predicated region
      $region57: #{tpu_custom_call.1} parent=5 // pred_check
        %p1081 = pneg %p1080
      $region58: #{tpu_custom_call.1} parent=5 // pred_check_branch
        %1083 = sbr.rel (%p1081) target = $region60
      $region59: #{tpu_custom_call.1} parent=5 // pred_region
        %s1084 = ssub.s32 %s18, 2
        // Predicated region
        $region61: #{tpu_custom_call.1} parent=59 // pred_check
          %p1085 = pneg %p152
        $region62: #{tpu_custom_call.1} parent=59 // pred_check_branch
          %1087 = sbr.rel (%p1085) target = $region64
        $region63: #{tpu_custom_call.1} parent=59 // pred_region
          %s1088 = sand.u32 %s137, 1
          %s1089 = scalar_lea.sflag [#allocation8], %s1088
          %s1090 = sand.u32 %s137, 1
          %s1091 = smul.addr %s1090, 16
          %s1092 = scalar_lea.vmem [#allocation12], %s1091
          %1093 = dma.done %s1089, 256
        $region64: #{tpu_custom_call.1} parent=59 // pred_fallthru
          _
      $region60: #{tpu_custom_call.1} parent=5 // pred_fallthru
        _
    $region6: #{tpu_custom_call.1} parent=1 // loop_footer
      %s22 = sadd.s32 1, %s18
    $region7: #{tpu_custom_call.1} parent=1 // loop_footer_branch
      %17 = sbr.rel target = $region3
    $region8: #{tpu_custom_call.1} parent=1 // loop_exit
      _
    %1094 = vsyncpa [#allocation7], 1
    %s1095 = scalar_lea.sflag [#allocation7], 1
    %1096 = vsyncpa %s1095, 1
    %1097 = vsyncpa [#allocation10], 1
    %s1098 = scalar_lea.sflag [#allocation10], 1
    %1099 = vsyncpa %s1098, 1
    %1100 = vsyncpa [#allocation8], 1
    %s1101 = scalar_lea.sflag [#allocation8], 1
    %1102 = vsyncpa %s1101, 1

</llo_original>
